<compile_context>
chip_gen: v5e
topology: v5e:2x2
jax: 0.10.0
libtpu: 0.0.40
codegen_flags: <defaults>
</compile_context>

<pallas_src>
import numpy as np
import jax
import jax.numpy as jnp
from jax import lax
from jax.experimental import pallas as pl
from jax.experimental.pallas import tpu as pltpu


def make_kernel(k):
    """Matches PyTorch make_kernel: 1-D kernels become separable 2-D, normalized."""
    k = np.asarray(k, dtype=np.float64)
    if k.ndim == 1:
        k = k[None, :] * k[:, None]
    k = k / k.sum()
    return k.astype(np.float32)


def _round_up(a, m):
    return -(-a // m) * m


def _tile_bytes(rows, cols, itemsize):
    """VMEM footprint of a 2-D tile including (sublane, 128-lane) padding."""
    sub = max(8, 32 // itemsize)          # f32 -> 8, bf16 -> 16
    return _round_up(rows, sub) * _round_up(cols, 128) * itemsize


def _tpu_vmem_info():
    """Per-TensorCore VMEM capacity and whether the chip has 2 TCs (v7x-like)."""
    vmem = None
    try:
        vmem = int(pltpu.get_tpu_info().vmem_capacity_bytes)
    except Exception:
        vmem = None
    kind = ""
    try:
        kind = jax.devices()[0].device_kind.lower()
    except Exception:
        pass
    is_v7 = "v7" in kind
    if vmem is None:
        vmem = (64 << 20) if is_v7 else (128 << 20)
    if is_v7:
        vmem = min(vmem, 64 << 20)        # per-TC VMEM on v7x
    two_tc = is_v7 or vmem < (96 << 20)
    return vmem, two_tc


class UpsamplePallas:
    """Pallas TPU implementation of StyleGAN2 Upsample (upfirdn2d, up=factor, down=1)."""

    def __init__(self, kernel=(1, 3, 3, 1), factor=2, plane_batch_budget_bytes=None):
        self.factor = int(factor)
        k_raw = np.asarray(kernel, dtype=np.float64)
        self.kernel = make_kernel(kernel) * (self.factor ** 2)   # (kh, kw) f32 buffer
        kh, kw = self.kernel.shape
        p = kh - self.factor
        self.pad = ((p + 1) // 2 + self.factor - 1, p // 2)
        self._budget = plane_batch_budget_bytes                  # None -> per-gen default
        self._vmem_cap, self._two_tc = _tpu_vmem_info()
        self._cache = {}

        # upfirdn2d does true convolution with `kernel`, i.e. cross-correlation with the
        # flipped kernel.  Decompose kflip into rank-1 terms (exact for 1-D kernel specs;
        # SVD-truncated for arbitrary 2-D kernels).
        if k_raw.ndim == 1:
            k1 = k_raw / k_raw.sum()
            u = self.factor * k1[::-1]
            self._uv = [(u, u.copy())]
        else:
            kflip = np.asarray(self.kernel, dtype=np.float64)[::-1, ::-1]
            U, S, Vt = np.linalg.svd(kflip)
            keep = [r for r in range(len(S)) if S[r] > 1e-7 * max(S[0], 1e-30)]
            self._uv = [(U[:, r] * S[r], Vt[r]) for r in keep]

    # Banded matrix folding zero-insertion + zero/crop padding + 1-D FIR:
    # A[o, i] = taps[f*i + pad0 - o] if that tap index is in range, else 0.
    def _banded(self, taps, out_len, in_len, pad0, klen):
        o = np.arange(out_len)[:, None]
        i = np.arange(in_len)[None, :]
        a = self.factor * i + pad0 - o
        valid = (a >= 0) & (a < klen)
        taps = np.asarray(taps, dtype=np.float64)
        A = np.where(valid, taps[np.clip(a, 0, klen - 1)], 0.0)
        return A.astype(np.float32)

    def _build(self, shape, dtype, use_buffered):
        N, C, H, W = shape
        f = self.factor
        pad0, pad1 = self.pad
        kh, kw = self.kernel.shape
        OH = H * f + pad0 + pad1 - kh + 1        # == f * H for this module's padding
        OW = W * f + pad0 + pad1 - kw + 1        # == f * W
        NC = N * C
        R = len(self._uv)

        # ---- dtype policy: bf16 matmuls for bf16 inputs, exact f32 otherwise --------
        cdt = jnp.bfloat16 if dtype == np.dtype(jnp.bfloat16) else jnp.float32
        cdt_item = np.dtype(cdt).itemsize
        in_item = dtype.itemsize
        need_cast = dtype != np.dtype(cdt)

        Ah = jnp.asarray(np.stack(
            [self._banded(u, OH, H, pad0, kh) for u, _ in self._uv]), dtype=cdt)       # (R, OH, H)
        AwT = jnp.asarray(np.stack(
            [self._banded(v, OW, W, pad0, kw).T for _, v in self._uv]), dtype=cdt)     # (R, W, OW)

        packed = OW < 128                         # lane-dense packed output for small OW

        # ---- per-generation VMEM budgeting (tile-padding aware) ----------------------
        cap = int(self._vmem_cap * 0.82)          # leave compiler headroom
        plane_budget = self._budget if self._budget is not None else (
            (14 << 20) if self._two_tc else (28 << 20))
        min_steps = 4 if self._two_tc else 2      # keep both v7x TCs pipelined

        consts = 2 * R * (_tile_bytes(OH, H, cdt_item) + _tile_bytes(W, OW, cdt_item))
        per_plane = 2 * _tile_bytes(H, W, in_item) + 2 * _tile_bytes(OH, OW, in_item)
        if packed:
            per_plane += _round_up(H, max(8, 32 // cdt_item)) * OW * cdt_item   # S columns
            per_plane += 2 * _round_up(OH, 8) * OW * 4                          # f32 acc + slack
            fixed_tmp = 0
        else:
            fixed_tmp = 2 * (_tile_bytes(OH, W, 4) + _tile_bytes(OH, OW, 4))    # 2 unrolled temps
        fixed = consts + fixed_tmp + (2 << 20)

        avail = max(cap - fixed, per_plane)
        b_cap = max(1, min(avail // per_plane, max(1, plane_budget // per_plane)))
        b_cap = int(min(b_cap, max(1, NC // min_steps), NC))
        if packed:
            b_cap = min(b_cap, 32)                # bound static plane unroll / concat width

        B = 1
        for d in range(1, b_cap + 1):
            if NC % d == 0:
                B = d
        if 2 * B < b_cap:                         # awkward NC: pad planes instead of B=1
            B = b_cap
        G = -(-NC // B)
        NC_pad = G * B

        vmem_limit = int(min(cap, max(32 << 20, int(1.5 * (fixed + per_plane * B)))))

        const_kwargs = {"pipeline_mode": pl.Buffered(1)} if use_buffered else {}
        x_spec = pl.BlockSpec((B, H, W), lambda i: (i, 0, 0))
        ah_spec = pl.BlockSpec((R, OH, H), lambda i: (0, 0, 0), **const_kwargs)
        awt_spec = pl.BlockSpec((R, W, OW), lambda i: (0, 0, 0), **const_kwargs)

        if packed:
            # One wide MXU matmul per rank; single lane-dense packed store.
            out_shape = jax.ShapeDtypeStruct((G, OH, B * OW), dtype)
            out_spec = pl.BlockSpec((1, OH, B * OW), lambda i: (i, 0, 0))

            def kernel(x_ref, ah_ref, awt_ref, o_ref):
                acc = None
                for r in range(R):                       # static, R in {1..4}
                    awt_r = awt_ref[r]                   # hoisted constant read
                    parts = []
                    for b in range(B):                   # static unroll (B <= 32)
                        xb = x_ref[b]
                        if need_cast:
                            xb = xb.astype(cdt)
                        parts.append(jnp.dot(xb, awt_r,
                                             preferred_element_type=jnp.float32).astype(cdt))
                    s = jnp.concatenate(parts, axis=1) if B > 1 else parts[0]   # (H, B*OW)
                    part = jnp.dot(ah_ref[r], s, preferred_element_type=jnp.float32)
                    acc = part if acc is None else acc + part
                o_ref[0] = acc.astype(o_ref.dtype)
        else:
            # OW >= 128: per-plane matmuls, stores are already lane-dense.
            out_shape = jax.ShapeDtypeStruct((NC_pad, OH, OW), dtype)
            out_spec = pl.BlockSpec((B, OH, OW), lambda i: (i, 0, 0))

            def kernel(x_ref, ah_ref, awt_ref, o_ref):
                ahs = [ah_ref[r] for r in range(R)]      # hoisted constant reads
                awts = [awt_ref[r] for r in range(R)]

                def one_plane(b, carry):
                    xb = x_ref[b]
                    if need_cast:
                        xb = xb.astype(cdt)
                    t = jnp.dot(ahs[0], xb, preferred_element_type=jnp.float32).astype(cdt)
                    acc = jnp.dot(t, awts[0], preferred_element_type=jnp.float32)
                    for r in range(1, R):
                        t = jnp.dot(ahs[r], xb, preferred_element_type=jnp.float32).astype(cdt)
                        acc = acc + jnp.dot(t, awts[r], preferred_element_type=jnp.float32)
                    o_ref[b] = acc.astype(o_ref.dtype)
                    return carry

                if B == 1:
                    one_plane(0, 0)
                else:
                    lax.fori_loop(0, B, one_plane, 0, unroll=min(B, 2))   # capped unroll

        call = pl.pallas_call(
            kernel,
            out_shape=out_shape,
            grid_spec=pltpu.PrefetchScalarGridSpec(
                num_scalar_prefetch=0,
                grid=(G,),
                in_specs=[x_spec, ah_spec, awt_spec],
                out_specs=out_spec,
            ),
            compiler_params=pltpu.CompilerParams(
                dimension_semantics=("parallel",),
                vmem_limit_bytes=vmem_limit,
            ),
        )

        # TODO(synk): above a per-generation plane-size threshold (~512px on v5e, ~1024px
        # on v6e, larger on v7x) switch to an H-tiled polyphase/VPU path: the banded
        # formulation does O(H) MACs/output vs kh*kw/f^2 for polyphase, and A_h/A_w grow
        # as O(H^2) which eats v7x's 64 MiB VMEM.

        def run(x):
            x_flat = x.reshape(NC, H, W)
            if NC_pad != NC:
                x_flat = jnp.pad(x_flat, ((0, NC_pad - NC), (0, 0), (0, 0)))
            out = call(x_flat, Ah, AwT)
            if packed:
                out = out.reshape(G, OH, B, OW).transpose(0, 2, 1, 3).reshape(NC_pad, OH, OW)
            return out[:NC].reshape(N, C, OH, OW)

        return run

    def __call__(self, x):
        key = (tuple(x.shape), np.dtype(x.dtype).name)
        fn = self._cache.get(key)
        if fn is not None:
            return fn(x)
        last_err = None
        for use_buffered in (True, False):   # fall back if pipeline_mode is unsupported
            try:
                cand = jax.jit(self._build(tuple(x.shape), np.dtype(x.dtype), use_buffered))
                out = jax.block_until_ready(cand(x))
            except Exception as e:
                last_err = e
                continue
            self._cache[key] = cand
            return out
        raise last_err


def _reference_upfirdn_upsample(x, kernel, factor, pad):
    """Pure-JAX reference: dilated depthwise conv (cross-correlation w/ flipped k)."""
    N, C, H, W = x.shape
    pad0, pad1 = pad
    kflip = jnp.asarray(np.ascontiguousarray(kernel[::-1, ::-1]), dtype=jnp.float32)
    rhs = jnp.tile(kflip[None, None], (C, 1, 1, 1))  # (C,1,kh,kw) depthwise
    # lhs_dilation inserts (f-1) zeros BETWEEN samples; upfirdn also appends (f-1)
    # trailing zeros, so extend the trailing pad by (f-1) (those taps hit zeros).
    return lax.conv_general_dilated(
        x.astype(jnp.float32), rhs,
        window_strides=(1, 1),
        padding=((pad0, pad1 + factor - 1), (pad0, pad1 + factor - 1)),
        lhs_dilation=(factor, factor),
        dimension_numbers=("NCHW", "OIHW", "NCHW"),
        feature_group_count=C,
    ).astype(x.dtype)


if __name__ == "__main__":
    key = jax.random.PRNGKey(0)
    N, C, H, W = 2, 4, 16, 16
    x = jax.random.normal(key, (N, C, H, W), dtype=jnp.float32)

    mod = UpsamplePallas(kernel=(1, 3, 3, 1), factor=2)

    # f32 path (packed small-OW route), exact tolerance.
    out = jax.block_until_ready(mod(x))
    assert out.shape == (N, C, H * 2, W * 2), out.shape
    ref = jax.block_until_ready(
        _reference_upfirdn_upsample(x, mod.kernel, mod.factor, mod.pad))
    err = float(np.max(np.abs(np.asarray(out) - np.asarray(ref))))
    assert np.allclose(np.asarray(out), np.asarray(ref), atol=1e-5, rtol=1e-5), err

    # bf16 path (bf16 MXU matmuls, f32 accumulate), loose tolerance.
    xb = x.astype(jnp.bfloat16)
    outb = jax.block_until_ready(mod(xb))
    refb = _reference_upfirdn_upsample(xb.astype(jnp.float32), mod.kernel, mod.factor, mod.pad)
    errb = float(np.max(np.abs(np.asarray(outb.astype(jnp.float32)) - np.asarray(refb))))
    assert errb < 0.1, errb

    # Larger plane to exercise the direct (OW >= 128, lane-dense per-plane store) route.
    x2 = jax.random.normal(jax.random.PRNGKey(1), (1, 2, 64, 64), dtype=jnp.float32)
    out2 = jax.block_until_ready(mod(x2))
    ref2 = _reference_upfirdn_upsample(x2, mod.kernel, mod.factor, mod.pad)
    err2 = float(np.max(np.abs(np.asarray(out2) - np.asarray(ref2))))
    assert np.allclose(np.asarray(out2), np.asarray(ref2), atol=1e-5, rtol=1e-5), err2

    print("KERNEL_OK")
</pallas_src>

<mosaic_0001>
module attributes {stable_mosaic.version = 11 : i64} {
  func.func @kernel(%arg0: i32, %arg1: memref<4x16x16xf32, #tpu.memory_space<vmem>>, %arg2: memref<1x32x16xf32, #tpu.memory_space<vmem>>, %arg3: memref<1x16x32xf32, #tpu.memory_space<vmem>>, %arg4: memref<1x32x128xf32, #tpu.memory_space<vmem>>) attributes {dimension_semantics = [#tpu.dimension_semantics<parallel>], iteration_bounds = array<i64: 2>, scalar_prefetch = 0 : i64, scratch_operands = 0 : i64, tpu.core_type = #tpu.core_type<tc>, window_params = [{transform_indices = @transform_0, window_bounds = array<i64: 4, 16, 16>}, {pipeline_mode = #tpu.pipeline_mode<synchronous>, transform_indices = @transform_1, window_bounds = array<i64: 1, 32, 16>}, {pipeline_mode = #tpu.pipeline_mode<synchronous>, transform_indices = @transform_2, window_bounds = array<i64: 1, 16, 32>}, {transform_indices = @transform_3, window_bounds = array<i64: 1, 32, 128>}]} {
    %c0 = arith.constant 0 : index
    %c0_0 = arith.constant 0 : index
    %c0_1 = arith.constant 0 : index
    %0 = vector.load %arg3[%c0, %c0_0, %c0_1] : memref<1x16x32xf32, #tpu.memory_space<vmem>>, vector<1x16x32xf32>
    %1 = vector.shape_cast %0 : vector<1x16x32xf32> to vector<16x32xf32>
    %c0_2 = arith.constant 0 : index
    %c0_3 = arith.constant 0 : index
    %c0_4 = arith.constant 0 : index
    %2 = vector.load %arg1[%c0_2, %c0_3, %c0_4] : memref<4x16x16xf32, #tpu.memory_space<vmem>>, vector<1x16x16xf32>
    %3 = vector.shape_cast %2 : vector<1x16x16xf32> to vector<16x16xf32>
    %cst = arith.constant dense<0.000000e+00> : vector<16x32xf32>
    %4 = tpu.matmul %3, %1, %cst {dimension_numbers = #tpu.dot_dimension_numbers<[1], [0], [0], [1], [0, 0, 1, 1], [], []>} : vector<16x16xf32>, vector<16x32xf32>, vector<16x32xf32> -> vector<16x32xf32>
    %c1 = arith.constant 1 : index
    %c0_5 = arith.constant 0 : index
    %c0_6 = arith.constant 0 : index
    %5 = vector.load %arg1[%c1, %c0_5, %c0_6] : memref<4x16x16xf32, #tpu.memory_space<vmem>>, vector<1x16x16xf32>
    %6 = vector.shape_cast %5 : vector<1x16x16xf32> to vector<16x16xf32>
    %cst_7 = arith.constant dense<0.000000e+00> : vector<16x32xf32>
    %7 = tpu.matmul %6, %1, %cst_7 {dimension_numbers = #tpu.dot_dimension_numbers<[1], [0], [0], [1], [0, 0, 1, 1], [], []>} : vector<16x16xf32>, vector<16x32xf32>, vector<16x32xf32> -> vector<16x32xf32>
    %c2 = arith.constant 2 : index
    %c0_8 = arith.constant 0 : index
    %c0_9 = arith.constant 0 : index
    %8 = vector.load %arg1[%c2, %c0_8, %c0_9] : memref<4x16x16xf32, #tpu.memory_space<vmem>>, vector<1x16x16xf32>
    %9 = vector.shape_cast %8 : vector<1x16x16xf32> to vector<16x16xf32>
    %cst_10 = arith.constant dense<0.000000e+00> : vector<16x32xf32>
    %10 = tpu.matmul %9, %1, %cst_10 {dimension_numbers = #tpu.dot_dimension_numbers<[1], [0], [0], [1], [0, 0, 1, 1], [], []>} : vector<16x16xf32>, vector<16x32xf32>, vector<16x32xf32> -> vector<16x32xf32>
    %c3 = arith.constant 3 : index
    %c0_11 = arith.constant 0 : index
    %c0_12 = arith.constant 0 : index
    %11 = vector.load %arg1[%c3, %c0_11, %c0_12] : memref<4x16x16xf32, #tpu.memory_space<vmem>>, vector<1x16x16xf32>
    %12 = vector.shape_cast %11 : vector<1x16x16xf32> to vector<16x16xf32>
    %cst_13 = arith.constant dense<0.000000e+00> : vector<16x32xf32>
    %13 = tpu.matmul %12, %1, %cst_13 {dimension_numbers = #tpu.dot_dimension_numbers<[1], [0], [0], [1], [0, 0, 1, 1], [], []>} : vector<16x16xf32>, vector<16x32xf32>, vector<16x32xf32> -> vector<16x32xf32>
    %14 = tpu.concatenate %4, %7, %10, %13 in 1 : vector<16x32xf32>, vector<16x32xf32>, vector<16x32xf32>, vector<16x32xf32> -> vector<16x128xf32>
    %c0_14 = arith.constant 0 : index
    %c0_15 = arith.constant 0 : index
    %c0_16 = arith.constant 0 : index
    %15 = vector.load %arg2[%c0_14, %c0_15, %c0_16] : memref<1x32x16xf32, #tpu.memory_space<vmem>>, vector<1x32x16xf32>
    %16 = vector.shape_cast %15 : vector<1x32x16xf32> to vector<32x16xf32>
    %cst_17 = arith.constant dense<0.000000e+00> : vector<32x128xf32>
    %17 = tpu.matmul %16, %14, %cst_17 {dimension_numbers = #tpu.dot_dimension_numbers<[1], [0], [0], [1], [0, 0, 1, 1], [], []>} : vector<32x16xf32>, vector<16x128xf32>, vector<32x128xf32> -> vector<32x128xf32>
    %c0_18 = arith.constant 0 : index
    %c0_19 = arith.constant 0 : index
    %c0_20 = arith.constant 0 : index
    %18 = vector.load %arg4[%c0_18, %c0_19, %c0_20] : memref<1x32x128xf32, #tpu.memory_space<vmem>>, vector<1x32x128xf32>
    %19 = vector.shape_cast %18 : vector<1x32x128xf32> to vector<32x128xf32>
    %20 = vector.shape_cast %17 : vector<32x128xf32> to vector<1x32x128xf32>
    tpu.vector_store %arg4[%c0_18, %c0_19, %c0_20], %20 {strides = array<i32>} : memref<1x32x128xf32, #tpu.memory_space<vmem>>, vector<1x32x128xf32>,
    return
  }
  func.func @transform_0(%arg0: i32) -> (i32, i32, i32) {
    %c0_i32 = arith.constant 0 : i32
    %c0_i32_0 = arith.constant 0 : i32
    %c0_i32_1 = arith.constant 0 : i32
    return %arg0, %c0_i32, %c0_i32_0 : i32, i32, i32
  }
  func.func @transform_1(%arg0: i32) -> (i32, i32, i32) {
    %c0_i32 = arith.constant 0 : i32
    %c0_i32_0 = arith.constant 0 : i32
    %c0_i32_1 = arith.constant 0 : i32
    %c0_i32_2 = arith.constant 0 : i32
    return %c0_i32, %c0_i32_0, %c0_i32_1 : i32, i32, i32
  }
  func.func @transform_2(%arg0: i32) -> (i32, i32, i32) {
    %c0_i32 = arith.constant 0 : i32
    %c0_i32_0 = arith.constant 0 : i32
    %c0_i32_1 = arith.constant 0 : i32
    %c0_i32_2 = arith.constant 0 : i32
    return %c0_i32, %c0_i32_0, %c0_i32_1 : i32, i32, i32
  }
  func.func @transform_3(%arg0: i32) -> (i32, i32, i32) {
    %c0_i32 = arith.constant 0 : i32
    %c0_i32_0 = arith.constant 0 : i32
    %c0_i32_1 = arith.constant 0 : i32
    return %arg0, %c0_i32, %c0_i32_0 : i32, i32, i32
  }
}

module attributes {stable_mosaic.version = 11 : i64} {
  func.func @kernel(%arg0: i32, %arg1: memref<4x16x16xf32, #tpu.memory_space<vmem>>, %arg2: memref<1x32x16xf32, #tpu.memory_space<vmem>>, %arg3: memref<1x16x32xf32, #tpu.memory_space<vmem>>, %arg4: memref<1x32x128xf32, #tpu.memory_space<vmem>>) attributes {dimension_semantics = [#tpu.dimension_semantics<parallel>], iteration_bounds = array<i64: 2>, scalar_prefetch = 0 : i64, scratch_operands = 0 : i64, tpu.core_type = #tpu.core_type<tc>, window_params = [{transform_indices = @transform_0, window_bounds = array<i64: 4, 16, 16>}, {pipeline_mode = #tpu.pipeline_mode<synchronous>, transform_indices = @transform_1, window_bounds = array<i64: 1, 32, 16>}, {pipeline_mode = #tpu.pipeline_mode<synchronous>, transform_indices = @transform_2, window_bounds = array<i64: 1, 16, 32>}, {transform_indices = @transform_3, window_bounds = array<i64: 1, 32, 128>}]} {
    %c0 = arith.constant 0 : index
    %c0_0 = arith.constant 0 : index
    %c0_1 = arith.constant 0 : index
    %0 = vector.load %arg3[%c0, %c0_0, %c0_1] : memref<1x16x32xf32, #tpu.memory_space<vmem>>, vector<1x16x32xf32>
    %1 = vector.shape_cast %0 : vector<1x16x32xf32> to vector<16x32xf32>
    %c0_2 = arith.constant 0 : index
    %c0_3 = arith.constant 0 : index
    %c0_4 = arith.constant 0 : index
    %2 = vector.load %arg1[%c0_2, %c0_3, %c0_4] : memref<4x16x16xf32, #tpu.memory_space<vmem>>, vector<1x16x16xf32>
    %3 = vector.shape_cast %2 : vector<1x16x16xf32> to vector<16x16xf32>
    %cst = arith.constant dense<0.000000e+00> : vector<16x32xf32>
    %4 = tpu.matmul %3, %1, %cst {dimension_numbers = #tpu.dot_dimension_numbers<[1], [0], [0], [1], [0, 0, 1, 1], [], []>} : vector<16x16xf32>, vector<16x32xf32>, vector<16x32xf32> -> vector<16x32xf32>
    %c1 = arith.constant 1 : index
    %c0_5 = arith.constant 0 : index
    %c0_6 = arith.constant 0 : index
    %5 = vector.load %arg1[%c1, %c0_5, %c0_6] : memref<4x16x16xf32, #tpu.memory_space<vmem>>, vector<1x16x16xf32>
    %6 = vector.shape_cast %5 : vector<1x16x16xf32> to vector<16x16xf32>
    %cst_7 = arith.constant dense<0.000000e+00> : vector<16x32xf32>
    %7 = tpu.matmul %6, %1, %cst_7 {dimension_numbers = #tpu.dot_dimension_numbers<[1], [0], [0], [1], [0, 0, 1, 1], [], []>} : vector<16x16xf32>, vector<16x32xf32>, vector<16x32xf32> -> vector<16x32xf32>
    %c2 = arith.constant 2 : index
    %c0_8 = arith.constant 0 : index
    %c0_9 = arith.constant 0 : index
    %8 = vector.load %arg1[%c2, %c0_8, %c0_9] : memref<4x16x16xf32, #tpu.memory_space<vmem>>, vector<1x16x16xf32>
    %9 = vector.shape_cast %8 : vector<1x16x16xf32> to vector<16x16xf32>
    %cst_10 = arith.constant dense<0.000000e+00> : vector<16x32xf32>
    %10 = tpu.matmul %9, %1, %cst_10 {dimension_numbers = #tpu.dot_dimension_numbers<[1], [0], [0], [1], [0, 0, 1, 1], [], []>} : vector<16x16xf32>, vector<16x32xf32>, vector<16x32xf32> -> vector<16x32xf32>
    %c3 = arith.constant 3 : index
    %c0_11 = arith.constant 0 : index
    %c0_12 = arith.constant 0 : index
    %11 = vector.load %arg1[%c3, %c0_11, %c0_12] : memref<4x16x16xf32, #tpu.memory_space<vmem>>, vector<1x16x16xf32>
    %12 = vector.shape_cast %11 : vector<1x16x16xf32> to vector<16x16xf32>
    %cst_13 = arith.constant dense<0.000000e+00> : vector<16x32xf32>
    %13 = tpu.matmul %12, %1, %cst_13 {dimension_numbers = #tpu.dot_dimension_numbers<[1], [0], [0], [1], [0, 0, 1, 1], [], []>} : vector<16x16xf32>, vector<16x32xf32>, vector<16x32xf32> -> vector<16x32xf32>
    %14 = tpu.concatenate %4, %7, %10, %13 in 1 : vector<16x32xf32>, vector<16x32xf32>, vector<16x32xf32>, vector<16x32xf32> -> vector<16x128xf32>
    %c0_14 = arith.constant 0 : index
    %c0_15 = arith.constant 0 : index
    %c0_16 = arith.constant 0 : index
    %15 = vector.load %arg2[%c0_14, %c0_15, %c0_16] : memref<1x32x16xf32, #tpu.memory_space<vmem>>, vector<1x32x16xf32>
    %16 = vector.shape_cast %15 : vector<1x32x16xf32> to vector<32x16xf32>
    %cst_17 = arith.constant dense<0.000000e+00> : vector<32x128xf32>
    %17 = tpu.matmul %16, %14, %cst_17 {dimension_numbers = #tpu.dot_dimension_numbers<[1], [0], [0], [1], [0, 0, 1, 1], [], []>} : vector<32x16xf32>, vector<16x128xf32>, vector<32x128xf32> -> vector<32x128xf32>
    %c0_18 = arith.constant 0 : index
    %c0_19 = arith.constant 0 : index
    %c0_20 = arith.constant 0 : index
    %18 = vector.load %arg4[%c0_18, %c0_19, %c0_20] : memref<1x32x128xf32, #tpu.memory_space<vmem>>, vector<1x32x128xf32>
    %19 = vector.shape_cast %18 : vector<1x32x128xf32> to vector<32x128xf32>
    %20 = vector.shape_cast %17 : vector<32x128xf32> to vector<1x32x128xf32>
    tpu.vector_store %arg4[%c0_18, %c0_19, %c0_20], %20 {strides = array<i32>} : memref<1x32x128xf32, #tpu.memory_space<vmem>>, vector<1x32x128xf32>,
    return
  }
  func.func @transform_0(%arg0: i32) -> (i32, i32, i32) {
    %c0_i32 = arith.constant 0 : i32
    %c0_i32_0 = arith.constant 0 : i32
    %c0_i32_1 = arith.constant 0 : i32
    return %arg0, %c0_i32, %c0_i32_0 : i32, i32, i32
  }
  func.func @transform_1(%arg0: i32) -> (i32, i32, i32) {
    %c0_i32 = arith.constant 0 : i32
    %c0_i32_0 = arith.constant 0 : i32
    %c0_i32_1 = arith.constant 0 : i32
    %c0_i32_2 = arith.constant 0 : i32
    return %c0_i32, %c0_i32_0, %c0_i32_1 : i32, i32, i32
  }
  func.func @transform_2(%arg0: i32) -> (i32, i32, i32) {
    %c0_i32 = arith.constant 0 : i32
    %c0_i32_0 = arith.constant 0 : i32
    %c0_i32_1 = arith.constant 0 : i32
    %c0_i32_2 = arith.constant 0 : i32
    return %c0_i32, %c0_i32_0, %c0_i32_1 : i32, i32, i32
  }
  func.func @transform_3(%arg0: i32) -> (i32, i32, i32) {
    %c0_i32 = arith.constant 0 : i32
    %c0_i32_0 = arith.constant 0 : i32
    %c0_i32_1 = arith.constant 0 : i32
    return %arg0, %c0_i32, %c0_i32_0 : i32, i32, i32
  }
}

</mosaic_0001>

<llo_original>
// kernel: run.1
$region0: #{run.1}
  #allocation0 [shape = 'u32[]', space=smem, size = 0x4, offset = 0x4, fixed_abs, tag = 'smem constant byte address 0x4 - core index']
  #allocation1 [shape = 'u32[72,128]{1,0:T(1,128)}', space=vmem, size = 0x9000, scoped, tag = 'internal scratch']
  %s0 = inlined_call_operand.hbm [shape: f32[8,16,16], index: 0, kind: input, shape index: {}]
  %s1 = inlined_call_operand.hbm [shape: f32[1,32,16], index: 1, kind: input, shape index: {}]
  %s2 = inlined_call_operand.hbm [shape: f32[1,16,32], index: 2, kind: input, shape index: {}]
  %s3 = inlined_call_operand.vmem [shape: f32[2,32,128], index: 3, kind: output, shape index: {}]
  %s4 = sld [smem:[#allocation0]]
  $region57: #{run.1} parent=0
    _
  %s6 = ssub.s32 1, %s4
  %s7 = scalar_select 0, %s6, %s4
  $region1: #{run.1} parent=0
    #allocation2 [shape = 'u8[65536]{0}', space=vmem, size = 0x10000, scoped, tag = 'input window, operand 0']
    #allocation3 [shape = 's32[2]{0}', space=sflag, size = 0x8, scoped, tag = 'scoped memory for run.1']
    #allocation4 [shape = 'u8[16384]{0}', space=vmem, size = 0x4000, scoped, tag = 'input window, operand 1, single buffered']
    #allocation5 [shape = 's32[1]{0}', space=sflag, size = 0x4, scoped, tag = 'scoped memory for run.1']
    #allocation6 [shape = 'u8[8192]{0}', space=vmem, size = 0x2000, scoped, tag = 'input window, operand 2, single buffered']
    %8 = vsyncpa [#allocation3], 0
    %s9 = scalar_lea.sflag [#allocation3], 1
    %10 = vsyncpa %s9, 0
    %11 = vsyncpa [#allocation5], 0
    loop: start=0, step=1, limit=4
    $region2: #{run.1} parent=1 // loop_pre_header
      _
    $region3: #{run.1} parent=1 // loop_header
      %s13 = sphi 0, %s17
      %p14 = scmp.ge.s32.totalorder %s13, 4
      %s23 = sphi 0, %s25
      %s26 = sphi 0, %s23
      %s27 = sphi 0, %s26
      %s43 = sphi 0, %s27
      %s47 = sphi 0, %s47
      %s49 = sphi 0, %s47
      %s50 = sphi 0, %s49
      %s64 = sphi 0, %s50
      %s68 = sphi 0, %s68
      %s70 = sphi 0, %s68
      %s71 = sphi 0, %s70
      %s85 = sphi 0, %s71
      %s91 = sphi 0, %s93
      %s94 = sphi 0, %s91
      %s95 = sphi 0, %s94
      %s111 = sphi 0, %s95
    $region4: #{run.1} parent=1 // loop_header_branch
      %16 = sbr.rel (%p14) target = $region8
    $region5: #{run.1} parent=1 // loop_body
      %s18 = ssub.s32 %s13, 1
      %s19 = ssub.s32 %s13, 2
      %s20 = sadd.s32 %s13, 1
      %s21 = ssub.s32 %s13, %s20
      %p22 = scmp.eq.s32.totalorder %s21, 0
      %s24 = sadd.s32 %s23, 1
      %s25 = scalar_select %p22, %s23, %s24
      %p28 = pneg %p22
      %p29 = scmp.eq.s32.totalorder %s13, 1
      %p30 = por %p28, %p29
      %p31 = scmp.ne.s32.totalorder %s23, %s26
      %p32 = scmp.eq.s32.totalorder %s13, 0
      %p33 = por %p31, %p32
      %p34 = scmp.ne.s32.totalorder %s23, %s26
      %p35 = scmp.eq.s32.totalorder %s18, 1
      %p36 = por %p34, %p35
      %p37 = scmp.ne.s32.totalorder %s26, %s27
      %p38 = scmp.eq.s32.totalorder %s18, 0
      %p39 = por %p37, %p38
      %p40 = scmp.ne.s32.totalorder %s26, %s27
      %p41 = scmp.eq.s32.totalorder %s19, 1
      %p42 = por %p40, %p41
      %p44 = scmp.ne.s32.totalorder %s27, %s43
      %p45 = scmp.eq.s32.totalorder %s19, 0
      %p46 = por %p44, %p45
      %s48 = sadd.s32 %s47, 1
      %p51 = scmp.eq.s32.totalorder %s13, 1
      %p52 = scmp.ne.s32.totalorder %s47, %s49
      %p53 = scmp.eq.s32.totalorder %s13, 0
      %p54 = por %p52, %p53
      %p55 = scmp.ne.s32.totalorder %s47, %s49
      %p56 = scmp.eq.s32.totalorder %s18, 1
      %p57 = por %p55, %p56
      %p58 = scmp.ne.s32.totalorder %s49, %s50
      %p59 = scmp.eq.s32.totalorder %s18, 0
      %p60 = por %p58, %p59
      %p61 = scmp.ne.s32.totalorder %s49, %s50
      %p62 = scmp.eq.s32.totalorder %s19, 1
      %p63 = por %p61, %p62
      %p65 = scmp.ne.s32.totalorder %s50, %s64
      %p66 = scmp.eq.s32.totalorder %s19, 0
      %p67 = por %p65, %p66
      %s69 = sadd.s32 %s68, 1
      %p72 = scmp.eq.s32.totalorder %s13, 1
      %p73 = scmp.ne.s32.totalorder %s68, %s70
      %p74 = scmp.eq.s32.totalorder %s13, 0
      %p75 = por %p73, %p74
      %p76 = scmp.ne.s32.totalorder %s68, %s70
      %p77 = scmp.eq.s32.totalorder %s18, 1
      %p78 = por %p76, %p77
      %p79 = scmp.ne.s32.totalorder %s70, %s71
      %p80 = scmp.eq.s32.totalorder %s18, 0
      %p81 = por %p79, %p80
      %p82 = scmp.ne.s32.totalorder %s70, %s71
      %p83 = scmp.eq.s32.totalorder %s19, 1
      %p84 = por %p82, %p83
      %p86 = scmp.ne.s32.totalorder %s71, %s85
      %p87 = scmp.eq.s32.totalorder %s19, 0
      %p88 = por %p86, %p87
      %s89 = ssub.s32 %s13, %s20
      %p90 = scmp.eq.s32.totalorder %s89, 0
      %s92 = sadd.s32 %s91, 1
      %s93 = scalar_select %p90, %s91, %s92
      %p96 = pneg %p90
      %p97 = scmp.eq.s32.totalorder %s13, 1
      %p98 = por %p96, %p97
      %p99 = scmp.ne.s32.totalorder %s91, %s94
      %p100 = scmp.eq.s32.totalorder %s13, 0
      %p101 = por %p99, %p100
      %p102 = scmp.ne.s32.totalorder %s91, %s94
      %p103 = scmp.eq.s32.totalorder %s18, 1
      %p104 = por %p102, %p103
      %p105 = scmp.ne.s32.totalorder %s94, %s95
      %p106 = scmp.eq.s32.totalorder %s18, 0
      %p107 = por %p105, %p106
      %p108 = scmp.ne.s32.totalorder %s94, %s95
      %p109 = scmp.eq.s32.totalorder %s19, 1
      %p110 = por %p108, %p109
      %p112 = scmp.ne.s32.totalorder %s95, %s111
      %p113 = scmp.eq.s32.totalorder %s19, 0
      %p114 = por %p112, %p113
      %p115 = scmp.le.s32.totalorder 1, %s13
      %p116 = scmp.lt.s32.totalorder %s13, 3
      %p117 = pnand %p115, %p116
      %p118 = pneg %p117
      // Predicated region
      $region9: #{run.1} parent=5 // pred_check
        _
      $region10: #{run.1} parent=5 // pred_check_branch
        %120 = sbr.rel (%p117) target = $region12
      $region11: #{run.1} parent=5 // pred_region
        %s121 = ssub.s32 %s13, 1
        // Predicated region
        $region13: #{run.1} parent=11 // pred_check
          %p122 = pneg %p60
        $region14: #{run.1} parent=11 // pred_check_branch
          %124 = sbr.rel (%p122) target = $region16
        $region15: #{run.1} parent=11 // pred_region
          %126 = vsyncadd [#allocation5], 0
          %s127 = sshll.u32 %s1, 4
          %s128 = int_to_ptr.hbm [resolvable:$true] %s127
          %s129 = sshll.u32 [#allocation4], 4
          %s130 = int_to_ptr.vmem [resolvable:$true] %s129
          %135 = dma.hbm_to_vmem [thread:$0]  %s128, 512, %s130, [#allocation5], 128, 128, 8
        $region16: #{run.1} parent=11 // pred_fallthru
          _
        // Predicated region
        $region17: #{run.1} parent=11 // pred_check
          %p136 = pneg %p81
        $region18: #{run.1} parent=11 // pred_check_branch
          %138 = sbr.rel (%p136) target = $region20
        $region19: #{run.1} parent=11 // pred_region
          %140 = vsyncadd [#allocation5], 0
          %s141 = sshll.u32 %s2, 4
          %s142 = int_to_ptr.hbm [resolvable:$true] %s141
          %s143 = sshll.u32 [#allocation6], 4
          %s144 = int_to_ptr.vmem [resolvable:$true] %s143
          %149 = dma.hbm_to_vmem [thread:$0]  %s142, 256, %s144, [#allocation5], 128, 128, 8
        $region20: #{run.1} parent=11 // pred_fallthru
          _
      $region12: #{run.1} parent=5 // pred_fallthru
        _
      %p150 = scmp.lt.s32.totalorder %s13, 2
      // Predicated region
      $region21: #{run.1} parent=5 // pred_check
        %p151 = pneg %p150
      $region22: #{run.1} parent=5 // pred_check_branch
        %153 = sbr.rel (%p151) target = $region24
      $region23: #{run.1} parent=5 // pred_region
        // Predicated region
        $region25: #{run.1} parent=23 // pred_check
          %p154 = pneg %p33
        $region26: #{run.1} parent=23 // pred_check_branch
          %156 = sbr.rel (%p154) target = $region28
        $region27: #{run.1} parent=23 // pred_region
          %s157 = sand.u32 %s23, 1
          %s158 = scalar_lea.sflag [#allocation3], %s157
          %s159 = sand.u32 %s23, 1
          %s160 = smul.addr %s159, 64
          %s161 = scalar_lea.vmem [#allocation2], %s160
          %s162 = smul.u32 4, %s13
          %164 = vsyncadd %s158, 0
          %s165 = smul.addr %s162, 2
          %s166 = smul.addr %s165, 8
          %s167 = scalar_lea.hbm %s0, %s166
          %s168 = sshll.u32 %s167, 4
          %s169 = int_to_ptr.hbm [resolvable:$true] %s168
          %s170 = sshll.u32 %s161, 4
          %s171 = int_to_ptr.vmem [resolvable:$true] %s170
          %176 = dma.hbm_to_vmem [thread:$0]  %s169, 1024, %s171, %s158, 128, 128, 8
        $region28: #{run.1} parent=23 // pred_fallthru
          _
      $region24: #{run.1} parent=5 // pred_fallthru
        _
      %p177 = scmp.le.s32.totalorder 1, %s13
      %p178 = scmp.lt.s32.totalorder %s13, 3
      %p179 = pnand %p177, %p178
      %p180 = pneg %p179
      // Predicated region
      $region29: #{run.1} parent=5 // pred_check
        _
      $region30: #{run.1} parent=5 // pred_check_branch
        %182 = sbr.rel (%p179) target = $region32
      $region31: #{run.1} parent=5 // pred_region
        %s183 = ssub.s32 %s13, 1
        %s184 = sand.u32 %s26, 1
        %s185 = scalar_lea.sflag [#allocation3], %s184
        %s186 = sand.u32 %s26, 1
        %s187 = smul.addr %s186, 64
        %s188 = scalar_lea.vmem [#allocation2], %s187
        // Predicated region
        $region33: #{run.1} parent=31 // pred_check
          %p189 = pneg %p39
        $region34: #{run.1} parent=31 // pred_check_branch
          %191 = sbr.rel (%p189) target = $region36
        $region35: #{run.1} parent=31 // pred_region
          %193 = dma.done %s185, 1024
        $region36: #{run.1} parent=31 // pred_fallthru
          _
        // Predicated region
        $region37: #{run.1} parent=31 // pred_check
          %p194 = pneg %p60
        $region38: #{run.1} parent=31 // pred_check_branch
          %196 = sbr.rel (%p194) target = $region40
        $region39: #{run.1} parent=31 // pred_region
          %198 = dma.done [#allocation5], 512
        $region40: #{run.1} parent=31 // pred_fallthru
          _
        // Predicated region
        $region41: #{run.1} parent=31 // pred_check
          %p199 = pneg %p81
        $region42: #{run.1} parent=31 // pred_check_branch
          %201 = sbr.rel (%p199) target = $region44
        $region43: #{run.1} parent=31 // pred_region
          %203 = dma.done [#allocation5], 256
        $region44: #{run.1} parent=31 // pred_fallthru
          _
        %s204 = sand.u32 %s26, 1
        %s205 = scalar_lea.sflag [#allocation3], %s204
        %s206 = sand.u32 %s26, 1
        %s207 = smul.addr %s206, 64
        %s208 = scalar_lea.vmem [#allocation2], %s207
        %p209 = pneg %p39
        %p210 = pneg %p36
        %p211 = pneg %p60
        %p212 = pneg %p57
        %p213 = pneg %p81
        %p214 = pneg %p78
        %p215 = pneg %p107
        %p216 = pneg %p104
        %p217 = scmp.lt.s32.totalorder %s18, 1
        %s218 = scalar_select %p217, %s18, 1
        %s219 = smul.addr %s218, 4
        %s220 = smul.addr %s219, 8
        %s221 = scalar_lea.vmem %s3, %s220
        %s222 = smul.u32 4, %s18
        %p223 = scmp.lt.s32.totalorder %s18, 1
        %s224 = scalar_select %p223, %s18, 1
        %s225 = smul.addr %s224, 4
        %s226 = smul.addr %s225, 8
        %s227 = scalar_lea.vmem %s3, %s226
        %v228 = vld [vmem:[#allocation6] sm:$0xff]
        %v229 = vld [vmem:[#allocation6 + $0x8] sm:$0xff]
        %v230 = vld [vmem:[%s188] sm:$0xff]
        %v231 = vld [vmem:[%s188 + $0x8] sm:$0xff]
        %vm232 = vcmask 130048
        %v234 = vsel %vm232, %v230, 0
        %v237 = vsel %vm232, %v231, 0
        %239 = vmatpush.msra.mxu0 0.0
        %240 = vmatpush.msra.mxu0 0.0
        %241 = vmatpush.msra.mxu0 0.0
        %242 = vmatpush.msra.mxu0 0.0
        %243 = vmatpush.msra.mxu0 0.0
        %244 = vmatpush.msra.mxu0 0.0
        %245 = vmatpush.msra.mxu0 0.0
        %246 = vmatpush.msra.mxu0 0.0
        %247 = vmatpush.msra.mxu0 0.0
        %248 = vmatpush.msra.mxu0 0.0
        %249 = vmatpush.msra.mxu0 0.0
        %250 = vmatpush.msra.mxu0 0.0
        %251 = vmatpush.msra.mxu0 0.0
        %252 = vmatpush.msra.mxu0 0.0
        %253 = vmatpush.msra.mxu0 %v229
        %254 = vmatpush.msra.mxu0 %v228
        %255 = vmatmul.f32.gmra.mxu0 %v234
        %v256 = vpop.f32.mrf.mxu0
        %v257 = vadd.f32 0.0, %v256
        %258 = vmatmul.f32.gmra.mxu0 %v237
        %v259 = vpop.f32.mrf.mxu0
        %v260 = vadd.f32 0.0, %v259
        %261 = vdwg.mxu0
        %s262 = scalar_lea.vmem %s188, 16 [#allocation2]
        %v263 = vld [vmem:[%s262] sm:$0xff]
        %v264 = vld [vmem:[%s262 + $0x8] sm:$0xff]
        %v266 = vsel %vm232, %v263, 0
        %v269 = vsel %vm232, %v264, 0
        %271 = vmatpush.msra.mxu0 0.0
        %272 = vmatpush.msra.mxu0 0.0
        %273 = vmatpush.msra.mxu0 0.0
        %274 = vmatpush.msra.mxu0 0.0
        %275 = vmatpush.msra.mxu0 0.0
        %276 = vmatpush.msra.mxu0 0.0
        %277 = vmatpush.msra.mxu0 0.0
        %278 = vmatpush.msra.mxu0 0.0
        %279 = vmatpush.msra.mxu0 0.0
        %280 = vmatpush.msra.mxu0 0.0
        %281 = vmatpush.msra.mxu0 0.0
        %282 = vmatpush.msra.mxu0 0.0
        %283 = vmatpush.msra.mxu0 0.0
        %284 = vmatpush.msra.mxu0 0.0
        %285 = vmatpush.msra.mxu0 %v229
        %286 = vmatpush.msra.mxu0 %v228
        %287 = vmatmul.f32.gmra.mxu0 %v266
        %v288 = vpop.f32.mrf.mxu0
        %v289 = vadd.f32 0.0, %v288
        %290 = vmatmul.f32.gmra.mxu0 %v269
        %v291 = vpop.f32.mrf.mxu0
        %v292 = vadd.f32 0.0, %v291
        %293 = vdwg.mxu0
        %s294 = scalar_lea.vmem %s188, 32 [#allocation2]
        %v295 = vld [vmem:[%s294] sm:$0xff]
        %v296 = vld [vmem:[%s294 + $0x8] sm:$0xff]
        %v298 = vsel %vm232, %v295, 0
        %v301 = vsel %vm232, %v296, 0
        %303 = vmatpush.msra.mxu0 0.0
        %304 = vmatpush.msra.mxu0 0.0
        %305 = vmatpush.msra.mxu0 0.0
        %306 = vmatpush.msra.mxu0 0.0
        %307 = vmatpush.msra.mxu0 0.0
        %308 = vmatpush.msra.mxu0 0.0
        %309 = vmatpush.msra.mxu0 0.0
        %310 = vmatpush.msra.mxu0 0.0
        %311 = vmatpush.msra.mxu0 0.0
        %312 = vmatpush.msra.mxu0 0.0
        %313 = vmatpush.msra.mxu0 0.0
        %314 = vmatpush.msra.mxu0 0.0
        %315 = vmatpush.msra.mxu0 0.0
        %316 = vmatpush.msra.mxu0 0.0
        %317 = vmatpush.msra.mxu0 %v229
        %318 = vmatpush.msra.mxu0 %v228
        %319 = vmatmul.f32.gmra.mxu0 %v298
        %v320 = vpop.f32.mrf.mxu0
        %v321 = vadd.f32 0.0, %v320
        %322 = vmatmul.f32.gmra.mxu0 %v301
        %v323 = vpop.f32.mrf.mxu0
        %v324 = vadd.f32 0.0, %v323
        %325 = vdwg.mxu0
        %s326 = scalar_lea.vmem %s188, 48 [#allocation2]
        %v327 = vld [vmem:[%s326] sm:$0xff]
        %v328 = vld [vmem:[%s326 + $0x8] sm:$0xff]
        %v330 = vsel %vm232, %v327, 0
        %v333 = vsel %vm232, %v328, 0
        %335 = vmatpush.msra.mxu0 0.0
        %336 = vmatpush.msra.mxu0 0.0
        %337 = vmatpush.msra.mxu0 0.0
        %338 = vmatpush.msra.mxu0 0.0
        %339 = vmatpush.msra.mxu0 0.0
        %340 = vmatpush.msra.mxu0 0.0
        %341 = vmatpush.msra.mxu0 0.0
        %342 = vmatpush.msra.mxu0 0.0
        %343 = vmatpush.msra.mxu0 0.0
        %344 = vmatpush.msra.mxu0 0.0
        %345 = vmatpush.msra.mxu0 0.0
        %346 = vmatpush.msra.mxu0 0.0
        %347 = vmatpush.msra.mxu0 0.0
        %348 = vmatpush.msra.mxu0 0.0
        %349 = vmatpush.msra.mxu0 %v229
        %350 = vmatpush.msra.mxu0 %v228
        %351 = vmatmul.f32.gmra.mxu0 %v330
        %v352 = vpop.f32.mrf.mxu0
        %v353 = vadd.f32 0.0, %v352
        %354 = vmatmul.f32.gmra.mxu0 %v333
        %v355 = vpop.f32.mrf.mxu0
        %v356 = vadd.f32 0.0, %v355
        %357 = vdwg.mxu0
        %360 = vrot.lane.b32.xlu0 %v289, 32
        %v361 = vpop.permute.xlu0 %360
        %362 = vrot.lane.b32.xlu0 %v292, 32
        %v363 = vpop.permute.xlu0 %362
        %368 = vrot.lane.b32.xlu0 %v321, 64
        %v369 = vpop.permute.xlu0 %368
        %370 = vrot.lane.b32.xlu0 %v324, 64
        %v371 = vpop.permute.xlu0 %370
        %376 = vrot.lane.b32.xlu0 %v353, 96
        %v377 = vpop.permute.xlu0 %376
        %378 = vrot.lane.b32.xlu0 %v356, 96
        %v379 = vpop.permute.xlu0 %378
        %vm382 = vcmask 261120
        %v383 = vsel %vm382, %v257, %v361
        %v384 = vsel %vm382, %v260, %v363
        %vm385 = vcmask 523264
        %v386 = vsel %vm385, %v383, %v369
        %v387 = vsel %vm385, %v384, %v371
        %vm388 = vcmask 785408
        %v389 = vsel %vm388, %v386, %v377
        %v390 = vsel %vm388, %v387, %v379
        %v391 = vld [vmem:[#allocation4] sm:$0xff]
        %v392 = vld [vmem:[#allocation4 + $0x8] sm:$0xff]
        %v393 = vld [vmem:[#allocation4 + $0x10] sm:$0xff]
        %v394 = vld [vmem:[#allocation4 + $0x18] sm:$0xff]
        %v396 = vsel %vm232, %v391, 0
        %v399 = vsel %vm232, %v392, 0
        %v402 = vsel %vm232, %v393, 0
        %v405 = vsel %vm232, %v394, 0
        %407 = vmatpush.msra.mxu0 0.0
        %408 = vmatpush.msra.mxu0 0.0
        %409 = vmatpush.msra.mxu0 0.0
        %410 = vmatpush.msra.mxu0 0.0
        %411 = vmatpush.msra.mxu0 0.0
        %412 = vmatpush.msra.mxu0 0.0
        %413 = vmatpush.msra.mxu0 0.0
        %414 = vmatpush.msra.mxu0 0.0
        %415 = vmatpush.msra.mxu0 0.0
        %416 = vmatpush.msra.mxu0 0.0
        %417 = vmatpush.msra.mxu0 0.0
        %418 = vmatpush.msra.mxu0 0.0
        %419 = vmatpush.msra.mxu0 0.0
        %420 = vmatpush.msra.mxu0 0.0
        %421 = vmatpush.msra.mxu0 %v390
        %422 = vmatpush.msra.mxu0 %v389
        %423 = vmatmul.f32.gmra.mxu0 %v396
        %v424 = vpop.f32.mrf.mxu0
        %v425 = vadd.f32 0.0, %v424
        %426 = vmatmul.f32.gmra.mxu0 %v399
        %v427 = vpop.f32.mrf.mxu0
        %v428 = vadd.f32 0.0, %v427
        %429 = vmatmul.f32.gmra.mxu0 %v402
        %v430 = vpop.f32.mrf.mxu0
        %v431 = vadd.f32 0.0, %v430
        %432 = vmatmul.f32.gmra.mxu0 %v405
        %v433 = vpop.f32.mrf.mxu0
        %v434 = vadd.f32 0.0, %v433
        %435 = vdwg.mxu0
        %436 = vst [vmem:[%s227] sm:$0xff] %v425
        %437 = vst [vmem:[%s227 + $0x8] sm:$0xff] %v428
        %438 = vst [vmem:[%s227 + $0x10] sm:$0xff] %v431
        %439 = vst [vmem:[%s227 + $0x18] sm:$0xff] %v434
        %p440 = scmp.lt.s32.totalorder %s18, 1
        %s441 = scalar_select %p440, %s18, 1
        %s442 = smul.addr %s441, 4
        %s443 = smul.addr %s442, 8
        %s444 = scalar_lea.vmem %s3, %s443
        // Predicated region
        $region45: #{run.1} parent=31 // pred_check
          %p445 = pneg %p104
        $region46: #{run.1} parent=31 // pred_check_branch
          %447 = sbr.rel (%p445) target = $region48
        $region47: #{run.1} parent=31 // pred_region
          _
        $region48: #{run.1} parent=31 // pred_fallthru
          _
      $region32: #{run.1} parent=5 // pred_fallthru
        _
      %p448 = scmp.le.s32.totalorder 2, %s13
      // Predicated region
      $region49: #{run.1} parent=5 // pred_check
        %p449 = pneg %p448
      $region50: #{run.1} parent=5 // pred_check_branch
        %451 = sbr.rel (%p449) target = $region52
      $region51: #{run.1} parent=5 // pred_region
        %s452 = ssub.s32 %s13, 2
        // Predicated region
        $region53: #{run.1} parent=51 // pred_check
          %p453 = pneg %p110
        $region54: #{run.1} parent=51 // pred_check_branch
          %455 = sbr.rel (%p453) target = $region56
        $region55: #{run.1} parent=51 // pred_region
          %p456 = scmp.lt.s32.totalorder %s19, 1
          %s457 = scalar_select %p456, %s19, 1
          %s458 = smul.addr %s457, 4
          %s459 = smul.addr %s458, 8
          %s460 = scalar_lea.vmem %s3, %s459
        $region56: #{run.1} parent=51 // pred_fallthru
          _
      $region52: #{run.1} parent=5 // pred_fallthru
        _
    $region6: #{run.1} parent=1 // loop_footer
      %s17 = sadd.s32 1, %s13
    $region7: #{run.1} parent=1 // loop_footer_branch
      %12 = sbr.rel target = $region3
    $region8: #{run.1} parent=1 // loop_exit
      _
    %461 = vsyncpa [#allocation3], 1
    %s462 = scalar_lea.sflag [#allocation3], 1
    %463 = vsyncpa %s462, 1
    %464 = vsyncpa [#allocation5], 1

// kernel: run.1
$region0: #{run.1}
  #allocation0 [shape = 'u32[]', space=smem, size = 0x4, offset = 0x4, fixed_abs, tag = 'smem constant byte address 0x4 - core index']
  #allocation1 [shape = 'u32[72,128]{1,0:T(1,128)}', space=vmem, size = 0x9000, scoped, tag = 'internal scratch']
  %s0 = inlined_call_operand.hbm [shape: f32[8,16,16], index: 0, kind: input, shape index: {}]
  %s1 = inlined_call_operand.hbm [shape: f32[1,32,16], index: 1, kind: input, shape index: {}]
  %s2 = inlined_call_operand.hbm [shape: f32[1,16,32], index: 2, kind: input, shape index: {}]
  %s3 = inlined_call_operand.vmem [shape: f32[2,32,128], index: 3, kind: output, shape index: {}]
  %s4 = sld [smem:[#allocation0]]
  $region57: #{run.1} parent=0
    _
  %s6 = ssub.s32 1, %s4
  %s7 = scalar_select 0, %s6, %s4
  $region1: #{run.1} parent=0
    #allocation2 [shape = 'u8[65536]{0}', space=vmem, size = 0x10000, scoped, tag = 'input window, operand 0']
    #allocation3 [shape = 's32[2]{0}', space=sflag, size = 0x8, scoped, tag = 'scoped memory for run.1']
    #allocation4 [shape = 'u8[16384]{0}', space=vmem, size = 0x4000, scoped, tag = 'input window, operand 1, single buffered']
    #allocation5 [shape = 's32[1]{0}', space=sflag, size = 0x4, scoped, tag = 'scoped memory for run.1']
    #allocation6 [shape = 'u8[8192]{0}', space=vmem, size = 0x2000, scoped, tag = 'input window, operand 2, single buffered']
    %8 = vsyncpa [#allocation3], 0
    %s9 = scalar_lea.sflag [#allocation3], 1
    %10 = vsyncpa %s9, 0
    %11 = vsyncpa [#allocation5], 0
    loop: start=0, step=1, limit=4
    $region2: #{run.1} parent=1 // loop_pre_header
      _
    $region3: #{run.1} parent=1 // loop_header
      %s13 = sphi 0, %s17
      %p14 = scmp.ge.s32.totalorder %s13, 4
      %s23 = sphi 0, %s25
      %s26 = sphi 0, %s23
      %s27 = sphi 0, %s26
      %s43 = sphi 0, %s27
      %s47 = sphi 0, %s47
      %s49 = sphi 0, %s47
      %s50 = sphi 0, %s49
      %s64 = sphi 0, %s50
      %s68 = sphi 0, %s68
      %s70 = sphi 0, %s68
      %s71 = sphi 0, %s70
      %s85 = sphi 0, %s71
      %s91 = sphi 0, %s93
      %s94 = sphi 0, %s91
      %s95 = sphi 0, %s94
      %s111 = sphi 0, %s95
    $region4: #{run.1} parent=1 // loop_header_branch
      %16 = sbr.rel (%p14) target = $region8
    $region5: #{run.1} parent=1 // loop_body
      %s18 = ssub.s32 %s13, 1
      %s19 = ssub.s32 %s13, 2
      %s20 = sadd.s32 %s13, 1
      %s21 = ssub.s32 %s13, %s20
      %p22 = scmp.eq.s32.totalorder %s21, 0
      %s24 = sadd.s32 %s23, 1
      %s25 = scalar_select %p22, %s23, %s24
      %p28 = pneg %p22
      %p29 = scmp.eq.s32.totalorder %s13, 1
      %p30 = por %p28, %p29
      %p31 = scmp.ne.s32.totalorder %s23, %s26
      %p32 = scmp.eq.s32.totalorder %s13, 0
      %p33 = por %p31, %p32
      %p34 = scmp.ne.s32.totalorder %s23, %s26
      %p35 = scmp.eq.s32.totalorder %s18, 1
      %p36 = por %p34, %p35
      %p37 = scmp.ne.s32.totalorder %s26, %s27
      %p38 = scmp.eq.s32.totalorder %s18, 0
      %p39 = por %p37, %p38
      %p40 = scmp.ne.s32.totalorder %s26, %s27
      %p41 = scmp.eq.s32.totalorder %s19, 1
      %p42 = por %p40, %p41
      %p44 = scmp.ne.s32.totalorder %s27, %s43
      %p45 = scmp.eq.s32.totalorder %s19, 0
      %p46 = por %p44, %p45
      %s48 = sadd.s32 %s47, 1
      %p51 = scmp.eq.s32.totalorder %s13, 1
      %p52 = scmp.ne.s32.totalorder %s47, %s49
      %p53 = scmp.eq.s32.totalorder %s13, 0
      %p54 = por %p52, %p53
      %p55 = scmp.ne.s32.totalorder %s47, %s49
      %p56 = scmp.eq.s32.totalorder %s18, 1
      %p57 = por %p55, %p56
      %p58 = scmp.ne.s32.totalorder %s49, %s50
      %p59 = scmp.eq.s32.totalorder %s18, 0
      %p60 = por %p58, %p59
      %p61 = scmp.ne.s32.totalorder %s49, %s50
      %p62 = scmp.eq.s32.totalorder %s19, 1
      %p63 = por %p61, %p62
      %p65 = scmp.ne.s32.totalorder %s50, %s64
      %p66 = scmp.eq.s32.totalorder %s19, 0
      %p67 = por %p65, %p66
      %s69 = sadd.s32 %s68, 1
      %p72 = scmp.eq.s32.totalorder %s13, 1
      %p73 = scmp.ne.s32.totalorder %s68, %s70
      %p74 = scmp.eq.s32.totalorder %s13, 0
      %p75 = por %p73, %p74
      %p76 = scmp.ne.s32.totalorder %s68, %s70
      %p77 = scmp.eq.s32.totalorder %s18, 1
      %p78 = por %p76, %p77
      %p79 = scmp.ne.s32.totalorder %s70, %s71
      %p80 = scmp.eq.s32.totalorder %s18, 0
      %p81 = por %p79, %p80
      %p82 = scmp.ne.s32.totalorder %s70, %s71
      %p83 = scmp.eq.s32.totalorder %s19, 1
      %p84 = por %p82, %p83
      %p86 = scmp.ne.s32.totalorder %s71, %s85
      %p87 = scmp.eq.s32.totalorder %s19, 0
      %p88 = por %p86, %p87
      %s89 = ssub.s32 %s13, %s20
      %p90 = scmp.eq.s32.totalorder %s89, 0
      %s92 = sadd.s32 %s91, 1
      %s93 = scalar_select %p90, %s91, %s92
      %p96 = pneg %p90
      %p97 = scmp.eq.s32.totalorder %s13, 1
      %p98 = por %p96, %p97
      %p99 = scmp.ne.s32.totalorder %s91, %s94
      %p100 = scmp.eq.s32.totalorder %s13, 0
      %p101 = por %p99, %p100
      %p102 = scmp.ne.s32.totalorder %s91, %s94
      %p103 = scmp.eq.s32.totalorder %s18, 1
      %p104 = por %p102, %p103
      %p105 = scmp.ne.s32.totalorder %s94, %s95
      %p106 = scmp.eq.s32.totalorder %s18, 0
      %p107 = por %p105, %p106
      %p108 = scmp.ne.s32.totalorder %s94, %s95
      %p109 = scmp.eq.s32.totalorder %s19, 1
      %p110 = por %p108, %p109
      %p112 = scmp.ne.s32.totalorder %s95, %s111
      %p113 = scmp.eq.s32.totalorder %s19, 0
      %p114 = por %p112, %p113
      %p115 = scmp.le.s32.totalorder 1, %s13
      %p116 = scmp.lt.s32.totalorder %s13, 3
      %p117 = pnand %p115, %p116
      %p118 = pneg %p117
      // Predicated region
      $region9: #{run.1} parent=5 // pred_check
        _
      $region10: #{run.1} parent=5 // pred_check_branch
        %120 = sbr.rel (%p117) target = $region12
      $region11: #{run.1} parent=5 // pred_region
        %s121 = ssub.s32 %s13, 1
        // Predicated region
        $region13: #{run.1} parent=11 // pred_check
          %p122 = pneg %p60
        $region14: #{run.1} parent=11 // pred_check_branch
          %124 = sbr.rel (%p122) target = $region16
        $region15: #{run.1} parent=11 // pred_region
          %126 = vsyncadd [#allocation5], 0
          %s127 = sshll.u32 %s1, 4
          %s128 = int_to_ptr.hbm [resolvable:$true] %s127
          %s129 = sshll.u32 [#allocation4], 4
          %s130 = int_to_ptr.vmem [resolvable:$true] %s129
          %135 = dma.hbm_to_vmem [thread:$0]  %s128, 512, %s130, [#allocation5], 128, 128, 8
        $region16: #{run.1} parent=11 // pred_fallthru
          _
        // Predicated region
        $region17: #{run.1} parent=11 // pred_check
          %p136 = pneg %p81
        $region18: #{run.1} parent=11 // pred_check_branch
          %138 = sbr.rel (%p136) target = $region20
        $region19: #{run.1} parent=11 // pred_region
          %140 = vsyncadd [#allocation5], 0
          %s141 = sshll.u32 %s2, 4
          %s142 = int_to_ptr.hbm [resolvable:$true] %s141
          %s143 = sshll.u32 [#allocation6], 4
          %s144 = int_to_ptr.vmem [resolvable:$true] %s143
          %149 = dma.hbm_to_vmem [thread:$0]  %s142, 256, %s144, [#allocation5], 128, 128, 8
        $region20: #{run.1} parent=11 // pred_fallthru
          _
      $region12: #{run.1} parent=5 // pred_fallthru
        _
      %p150 = scmp.lt.s32.totalorder %s13, 2
      // Predicated region
      $region21: #{run.1} parent=5 // pred_check
        %p151 = pneg %p150
      $region22: #{run.1} parent=5 // pred_check_branch
        %153 = sbr.rel (%p151) target = $region24
      $region23: #{run.1} parent=5 // pred_region
        // Predicated region
        $region25: #{run.1} parent=23 // pred_check
          %p154 = pneg %p33
        $region26: #{run.1} parent=23 // pred_check_branch
          %156 = sbr.rel (%p154) target = $region28
        $region27: #{run.1} parent=23 // pred_region
          %s157 = sand.u32 %s23, 1
          %s158 = scalar_lea.sflag [#allocation3], %s157
          %s159 = sand.u32 %s23, 1
          %s160 = smul.addr %s159, 64
          %s161 = scalar_lea.vmem [#allocation2], %s160
          %s162 = smul.u32 4, %s13
          %164 = vsyncadd %s158, 0
          %s165 = smul.addr %s162, 2
          %s166 = smul.addr %s165, 8
          %s167 = scalar_lea.hbm %s0, %s166
          %s168 = sshll.u32 %s167, 4
          %s169 = int_to_ptr.hbm [resolvable:$true] %s168
          %s170 = sshll.u32 %s161, 4
          %s171 = int_to_ptr.vmem [resolvable:$true] %s170
          %176 = dma.hbm_to_vmem [thread:$0]  %s169, 1024, %s171, %s158, 128, 128, 8
        $region28: #{run.1} parent=23 // pred_fallthru
          _
      $region24: #{run.1} parent=5 // pred_fallthru
        _
      %p177 = scmp.le.s32.totalorder 1, %s13
      %p178 = scmp.lt.s32.totalorder %s13, 3
      %p179 = pnand %p177, %p178
      %p180 = pneg %p179
      // Predicated region
      $region29: #{run.1} parent=5 // pred_check
        _
      $region30: #{run.1} parent=5 // pred_check_branch
        %182 = sbr.rel (%p179) target = $region32
      $region31: #{run.1} parent=5 // pred_region
        %s183 = ssub.s32 %s13, 1
        %s184 = sand.u32 %s26, 1
        %s185 = scalar_lea.sflag [#allocation3], %s184
        %s186 = sand.u32 %s26, 1
        %s187 = smul.addr %s186, 64
        %s188 = scalar_lea.vmem [#allocation2], %s187
        // Predicated region
        $region33: #{run.1} parent=31 // pred_check
          %p189 = pneg %p39
        $region34: #{run.1} parent=31 // pred_check_branch
          %191 = sbr.rel (%p189) target = $region36
        $region35: #{run.1} parent=31 // pred_region
          %193 = dma.done %s185, 1024
        $region36: #{run.1} parent=31 // pred_fallthru
          _
        // Predicated region
        $region37: #{run.1} parent=31 // pred_check
          %p194 = pneg %p60
        $region38: #{run.1} parent=31 // pred_check_branch
          %196 = sbr.rel (%p194) target = $region40
        $region39: #{run.1} parent=31 // pred_region
          %198 = dma.done [#allocation5], 512
        $region40: #{run.1} parent=31 // pred_fallthru
          _
        // Predicated region
        $region41: #{run.1} parent=31 // pred_check
          %p199 = pneg %p81
        $region42: #{run.1} parent=31 // pred_check_branch
          %201 = sbr.rel (%p199) target = $region44
        $region43: #{run.1} parent=31 // pred_region
          %203 = dma.done [#allocation5], 256
        $region44: #{run.1} parent=31 // pred_fallthru
          _
        %s204 = sand.u32 %s26, 1
        %s205 = scalar_lea.sflag [#allocation3], %s204
        %s206 = sand.u32 %s26, 1
        %s207 = smul.addr %s206, 64
        %s208 = scalar_lea.vmem [#allocation2], %s207
        %p209 = pneg %p39
        %p210 = pneg %p36
        %p211 = pneg %p60
        %p212 = pneg %p57
        %p213 = pneg %p81
        %p214 = pneg %p78
        %p215 = pneg %p107
        %p216 = pneg %p104
        %p217 = scmp.lt.s32.totalorder %s18, 1
        %s218 = scalar_select %p217, %s18, 1
        %s219 = smul.addr %s218, 4
        %s220 = smul.addr %s219, 8
        %s221 = scalar_lea.vmem %s3, %s220
        %s222 = smul.u32 4, %s18
        %p223 = scmp.lt.s32.totalorder %s18, 1
        %s224 = scalar_select %p223, %s18, 1
        %s225 = smul.addr %s224, 4
        %s226 = smul.addr %s225, 8
        %s227 = scalar_lea.vmem %s3, %s226
        %v228 = vld [vmem:[#allocation6] sm:$0xff]
        %v229 = vld [vmem:[#allocation6 + $0x8] sm:$0xff]
        %v230 = vld [vmem:[%s188] sm:$0xff]
        %v231 = vld [vmem:[%s188 + $0x8] sm:$0xff]
        %vm232 = vcmask 130048
        %v234 = vsel %vm232, %v230, 0
        %v237 = vsel %vm232, %v231, 0
        %239 = vmatpush.msra.mxu0 0.0
        %240 = vmatpush.msra.mxu0 0.0
        %241 = vmatpush.msra.mxu0 0.0
        %242 = vmatpush.msra.mxu0 0.0
        %243 = vmatpush.msra.mxu0 0.0
        %244 = vmatpush.msra.mxu0 0.0
        %245 = vmatpush.msra.mxu0 0.0
        %246 = vmatpush.msra.mxu0 0.0
        %247 = vmatpush.msra.mxu0 0.0
        %248 = vmatpush.msra.mxu0 0.0
        %249 = vmatpush.msra.mxu0 0.0
        %250 = vmatpush.msra.mxu0 0.0
        %251 = vmatpush.msra.mxu0 0.0
        %252 = vmatpush.msra.mxu0 0.0
        %253 = vmatpush.msra.mxu0 %v229
        %254 = vmatpush.msra.mxu0 %v228
        %255 = vmatmul.f32.gmra.mxu0 %v234
        %v256 = vpop.f32.mrf.mxu0
        %v257 = vadd.f32 0.0, %v256
        %258 = vmatmul.f32.gmra.mxu0 %v237
        %v259 = vpop.f32.mrf.mxu0
        %v260 = vadd.f32 0.0, %v259
        %261 = vdwg.mxu0
        %s262 = scalar_lea.vmem %s188, 16 [#allocation2]
        %v263 = vld [vmem:[%s262] sm:$0xff]
        %v264 = vld [vmem:[%s262 + $0x8] sm:$0xff]
        %v266 = vsel %vm232, %v263, 0
        %v269 = vsel %vm232, %v264, 0
        %271 = vmatpush.msra.mxu0 0.0
        %272 = vmatpush.msra.mxu0 0.0
        %273 = vmatpush.msra.mxu0 0.0
        %274 = vmatpush.msra.mxu0 0.0
        %275 = vmatpush.msra.mxu0 0.0
        %276 = vmatpush.msra.mxu0 0.0
        %277 = vmatpush.msra.mxu0 0.0
        %278 = vmatpush.msra.mxu0 0.0
        %279 = vmatpush.msra.mxu0 0.0
        %280 = vmatpush.msra.mxu0 0.0
        %281 = vmatpush.msra.mxu0 0.0
        %282 = vmatpush.msra.mxu0 0.0
        %283 = vmatpush.msra.mxu0 0.0
        %284 = vmatpush.msra.mxu0 0.0
        %285 = vmatpush.msra.mxu0 %v229
        %286 = vmatpush.msra.mxu0 %v228
        %287 = vmatmul.f32.gmra.mxu0 %v266
        %v288 = vpop.f32.mrf.mxu0
        %v289 = vadd.f32 0.0, %v288
        %290 = vmatmul.f32.gmra.mxu0 %v269
        %v291 = vpop.f32.mrf.mxu0
        %v292 = vadd.f32 0.0, %v291
        %293 = vdwg.mxu0
        %s294 = scalar_lea.vmem %s188, 32 [#allocation2]
        %v295 = vld [vmem:[%s294] sm:$0xff]
        %v296 = vld [vmem:[%s294 + $0x8] sm:$0xff]
        %v298 = vsel %vm232, %v295, 0
        %v301 = vsel %vm232, %v296, 0
        %303 = vmatpush.msra.mxu0 0.0
        %304 = vmatpush.msra.mxu0 0.0
        %305 = vmatpush.msra.mxu0 0.0
        %306 = vmatpush.msra.mxu0 0.0
        %307 = vmatpush.msra.mxu0 0.0
        %308 = vmatpush.msra.mxu0 0.0
        %309 = vmatpush.msra.mxu0 0.0
        %310 = vmatpush.msra.mxu0 0.0
        %311 = vmatpush.msra.mxu0 0.0
        %312 = vmatpush.msra.mxu0 0.0
        %313 = vmatpush.msra.mxu0 0.0
        %314 = vmatpush.msra.mxu0 0.0
        %315 = vmatpush.msra.mxu0 0.0
        %316 = vmatpush.msra.mxu0 0.0
        %317 = vmatpush.msra.mxu0 %v229
        %318 = vmatpush.msra.mxu0 %v228
        %319 = vmatmul.f32.gmra.mxu0 %v298
        %v320 = vpop.f32.mrf.mxu0
        %v321 = vadd.f32 0.0, %v320
        %322 = vmatmul.f32.gmra.mxu0 %v301
        %v323 = vpop.f32.mrf.mxu0
        %v324 = vadd.f32 0.0, %v323
        %325 = vdwg.mxu0
        %s326 = scalar_lea.vmem %s188, 48 [#allocation2]
        %v327 = vld [vmem:[%s326] sm:$0xff]
        %v328 = vld [vmem:[%s326 + $0x8] sm:$0xff]
        %v330 = vsel %vm232, %v327, 0
        %v333 = vsel %vm232, %v328, 0
        %335 = vmatpush.msra.mxu0 0.0
        %336 = vmatpush.msra.mxu0 0.0
        %337 = vmatpush.msra.mxu0 0.0
        %338 = vmatpush.msra.mxu0 0.0
        %339 = vmatpush.msra.mxu0 0.0
        %340 = vmatpush.msra.mxu0 0.0
        %341 = vmatpush.msra.mxu0 0.0
        %342 = vmatpush.msra.mxu0 0.0
        %343 = vmatpush.msra.mxu0 0.0
        %344 = vmatpush.msra.mxu0 0.0
        %345 = vmatpush.msra.mxu0 0.0
        %346 = vmatpush.msra.mxu0 0.0
        %347 = vmatpush.msra.mxu0 0.0
        %348 = vmatpush.msra.mxu0 0.0
        %349 = vmatpush.msra.mxu0 %v229
        %350 = vmatpush.msra.mxu0 %v228
        %351 = vmatmul.f32.gmra.mxu0 %v330
        %v352 = vpop.f32.mrf.mxu0
        %v353 = vadd.f32 0.0, %v352
        %354 = vmatmul.f32.gmra.mxu0 %v333
        %v355 = vpop.f32.mrf.mxu0
        %v356 = vadd.f32 0.0, %v355
        %357 = vdwg.mxu0
        %360 = vrot.lane.b32.xlu0 %v289, 32
        %v361 = vpop.permute.xlu0 %360
        %362 = vrot.lane.b32.xlu0 %v292, 32
        %v363 = vpop.permute.xlu0 %362
        %368 = vrot.lane.b32.xlu0 %v321, 64
        %v369 = vpop.permute.xlu0 %368
        %370 = vrot.lane.b32.xlu0 %v324, 64
        %v371 = vpop.permute.xlu0 %370
        %376 = vrot.lane.b32.xlu0 %v353, 96
        %v377 = vpop.permute.xlu0 %376
        %378 = vrot.lane.b32.xlu0 %v356, 96
        %v379 = vpop.permute.xlu0 %378
        %vm382 = vcmask 261120
        %v383 = vsel %vm382, %v257, %v361
        %v384 = vsel %vm382, %v260, %v363
        %vm385 = vcmask 523264
        %v386 = vsel %vm385, %v383, %v369
        %v387 = vsel %vm385, %v384, %v371
        %vm388 = vcmask 785408
        %v389 = vsel %vm388, %v386, %v377
        %v390 = vsel %vm388, %v387, %v379
        %v391 = vld [vmem:[#allocation4] sm:$0xff]
        %v392 = vld [vmem:[#allocation4 + $0x8] sm:$0xff]
        %v393 = vld [vmem:[#allocation4 + $0x10] sm:$0xff]
        %v394 = vld [vmem:[#allocation4 + $0x18] sm:$0xff]
        %v396 = vsel %vm232, %v391, 0
        %v399 = vsel %vm232, %v392, 0
        %v402 = vsel %vm232, %v393, 0
        %v405 = vsel %vm232, %v394, 0
        %407 = vmatpush.msra.mxu0 0.0
        %408 = vmatpush.msra.mxu0 0.0
        %409 = vmatpush.msra.mxu0 0.0
        %410 = vmatpush.msra.mxu0 0.0
        %411 = vmatpush.msra.mxu0 0.0
        %412 = vmatpush.msra.mxu0 0.0
        %413 = vmatpush.msra.mxu0 0.0
        %414 = vmatpush.msra.mxu0 0.0
        %415 = vmatpush.msra.mxu0 0.0
        %416 = vmatpush.msra.mxu0 0.0
        %417 = vmatpush.msra.mxu0 0.0
        %418 = vmatpush.msra.mxu0 0.0
        %419 = vmatpush.msra.mxu0 0.0
        %420 = vmatpush.msra.mxu0 0.0
        %421 = vmatpush.msra.mxu0 %v390
        %422 = vmatpush.msra.mxu0 %v389
        %423 = vmatmul.f32.gmra.mxu0 %v396
        %v424 = vpop.f32.mrf.mxu0
        %v425 = vadd.f32 0.0, %v424
        %426 = vmatmul.f32.gmra.mxu0 %v399
        %v427 = vpop.f32.mrf.mxu0
        %v428 = vadd.f32 0.0, %v427
        %429 = vmatmul.f32.gmra.mxu0 %v402
        %v430 = vpop.f32.mrf.mxu0
        %v431 = vadd.f32 0.0, %v430
        %432 = vmatmul.f32.gmra.mxu0 %v405
        %v433 = vpop.f32.mrf.mxu0
        %v434 = vadd.f32 0.0, %v433
        %435 = vdwg.mxu0
        %436 = vst [vmem:[%s227] sm:$0xff] %v425
        %437 = vst [vmem:[%s227 + $0x8] sm:$0xff] %v428
        %438 = vst [vmem:[%s227 + $0x10] sm:$0xff] %v431
        %439 = vst [vmem:[%s227 + $0x18] sm:$0xff] %v434
        %p440 = scmp.lt.s32.totalorder %s18, 1
        %s441 = scalar_select %p440, %s18, 1
        %s442 = smul.addr %s441, 4
        %s443 = smul.addr %s442, 8
        %s444 = scalar_lea.vmem %s3, %s443
        // Predicated region
        $region45: #{run.1} parent=31 // pred_check
          %p445 = pneg %p104
        $region46: #{run.1} parent=31 // pred_check_branch
          %447 = sbr.rel (%p445) target = $region48
        $region47: #{run.1} parent=31 // pred_region
          _
        $region48: #{run.1} parent=31 // pred_fallthru
          _
      $region32: #{run.1} parent=5 // pred_fallthru
        _
      %p448 = scmp.le.s32.totalorder 2, %s13
      // Predicated region
      $region49: #{run.1} parent=5 // pred_check
        %p449 = pneg %p448
      $region50: #{run.1} parent=5 // pred_check_branch
        %451 = sbr.rel (%p449) target = $region52
      $region51: #{run.1} parent=5 // pred_region
        %s452 = ssub.s32 %s13, 2
        // Predicated region
        $region53: #{run.1} parent=51 // pred_check
          %p453 = pneg %p110
        $region54: #{run.1} parent=51 // pred_check_branch
          %455 = sbr.rel (%p453) target = $region56
        $region55: #{run.1} parent=51 // pred_region
          %p456 = scmp.lt.s32.totalorder %s19, 1
          %s457 = scalar_select %p456, %s19, 1
          %s458 = smul.addr %s457, 4
          %s459 = smul.addr %s458, 8
          %s460 = scalar_lea.vmem %s3, %s459
        $region56: #{run.1} parent=51 // pred_fallthru
          _
      $region52: #{run.1} parent=5 // pred_fallthru
        _
    $region6: #{run.1} parent=1 // loop_footer
      %s17 = sadd.s32 1, %s13
    $region7: #{run.1} parent=1 // loop_footer_branch
      %12 = sbr.rel target = $region3
    $region8: #{run.1} parent=1 // loop_exit
      _
    %461 = vsyncpa [#allocation3], 1
    %s462 = scalar_lea.sflag [#allocation3], 1
    %463 = vsyncpa %s462, 1
    %464 = vsyncpa [#allocation5], 1

</llo_original>
